<compile_context>
chip_gen: v5e
topology: v5e:2x2
jax: 0.10.0
libtpu: 0.0.40
codegen_flags: <defaults>
</compile_context>

<pallas_src>
import functools

import jax
import jax.numpy as jnp
from jax.experimental import pallas as pl
from jax.experimental.pallas import tpu as pltpu

_LANE = 128


def _dice_partials_kernel(p_ref, t_ref, out_ref, *, apply_sigmoid, n_valid,
                          block_rows, needs_mask):
    """One grid step: reduce a (block_rows, 128) tile to 3 partial sums."""
    p = p_ref[...].astype(jnp.float32)
    t = t_ref[...].astype(jnp.float32)

    if apply_sigmoid:
        # sigmoid(x) == 0.5 * (tanh(x/2) + 1): a single EUP op per element.
        p = 0.5 * jnp.tanh(0.5 * p) + 0.5

    if needs_mask:
        # Last block may be ragged / zero-padded.  Select (not multiply) so any
        # undefined out-of-bounds contents are discarded, and so sigmoid(0)=0.5
        # padding does not leak into sum(pred).
        i = pl.program_id(0)
        row = jax.lax.broadcasted_iota(jnp.int32, p.shape, 0)
        col = jax.lax.broadcasted_iota(jnp.int32, p.shape, 1)
        gidx = (i * block_rows + row) * _LANE + col
        valid = gidx < n_valid
        p = jnp.where(valid, p, 0.0)
        t = jnp.where(valid, t, 0.0)

    inter = jnp.sum(p * t)   # intersection
    sum_p = jnp.sum(p)       # sum(y_pred)
    sum_t = jnp.sum(t)       # sum(y_true)

    # Broadcast each scalar over a full (8, 128) plane; the wrapper reads
    # [..., 0, 0].  Output traffic is ~12 KiB per block: negligible.
    out_ref[0, 0] = jnp.full((8, _LANE), inter, dtype=jnp.float32)
    out_ref[0, 1] = jnp.full((8, _LANE), sum_p, dtype=jnp.float32)
    out_ref[0, 2] = jnp.full((8, _LANE), sum_t, dtype=jnp.float32)


def dice_loss(y_pred, y_true, *, smooth=1.0, sigmoid=True, block_rows=4096):
    """Pallas implementation of DiceLoss.forward (returns a scalar)."""
    p = y_pred.reshape(-1)   # keep caller dtype; kernel upcasts in VMEM
    t = y_true.reshape(-1)
    n = p.shape[0]

    rows = pl.cdiv(n, _LANE)
    pad = rows * _LANE - n
    if pad:  # only when numel is not a multiple of 128
        p = jnp.pad(p, (0, pad))
        t = jnp.pad(t, (0, pad))
    p2 = p.reshape(rows, _LANE)
    t2 = t.reshape(rows, _LANE)

    # Block rows: as large as requested, clamped to the array; when tiling
    # (br < rows) the second-minor block dim must be a multiple of 8.
    br = min(int(block_rows), rows)
    if br != rows:
        br = max(8, (br // 8) * 8)
        if br >= rows:
            br = rows
    num_blocks = pl.cdiv(rows, br)
    needs_mask = (num_blocks * br * _LANE) != n

    kernel = functools.partial(
        _dice_partials_kernel,
        apply_sigmoid=bool(sigmoid),
        n_valid=int(n),
        block_rows=int(br),
        needs_mask=bool(needs_mask),
    )

    partials = pl.pallas_call(
        kernel,
        out_shape=jax.ShapeDtypeStruct((num_blocks, 3, 8, _LANE), jnp.float32),
        grid_spec=pltpu.PrefetchScalarGridSpec(
            num_scalar_prefetch=0,
            grid=(num_blocks,),
            in_specs=[
                pl.BlockSpec((br, _LANE), lambda i: (i, 0)),
                pl.BlockSpec((br, _LANE), lambda i: (i, 0)),
            ],
            out_specs=pl.BlockSpec((1, 3, 8, _LANE), lambda i: (i, 0, 0, 0)),
        ),
        compiler_params=pltpu.CompilerParams(
            # Blocks are independent -> shards across both TCs on v7x.
            dimension_semantics=("parallel",),
            # Headroom for 2 streams x 2 buffers x 2 MiB tiles + temporaries;
            # stays below v7x's 64 MiB physical VMEM.
            vmem_limit_bytes=48 * 1024 * 1024,
        ),
    )(p2, t2)

    totals = jnp.sum(partials[:, :, 0, 0], axis=0)   # (3,) partial-sum combine
    inter, sum_p, sum_t = totals[0], totals[1], totals[2]
    dice = (2.0 * inter + smooth) / (sum_p + sum_t + smooth)
    return 1.0 - dice


def dice_loss_ref(y_pred, y_true, *, smooth=1.0, sigmoid=True):
    """Pure-JAX reference matching the PyTorch module exactly."""
    p = y_pred
    if sigmoid:
        p = jax.nn.sigmoid(p)
    p = p.reshape(-1)
    t = y_true.reshape(-1)
    inter = jnp.sum(p * t)
    dice = (2.0 * inter + smooth) / (jnp.sum(p) + jnp.sum(t) + smooth)
    return 1.0 - dice


if __name__ == "__main__":
    key = jax.random.PRNGKey(0)
    k1, k2, k3, k4 = jax.random.split(key, 4)

    # Segmentation-style NCHW logits and binary targets.
    y_pred = jax.random.normal(k1, (2, 4, 16, 16), dtype=jnp.float32)
    y_true = (jax.random.uniform(k2, (2, 4, 16, 16)) > 0.5).astype(jnp.float32)

    loss = jax.block_until_ready(dice_loss(y_pred, y_true, smooth=1.0, sigmoid=True))
    ref = dice_loss_ref(y_pred, y_true, smooth=1.0, sigmoid=True)
    assert jnp.allclose(loss, ref, atol=1e-5, rtol=1e-5), (loss, ref)

    # Odd-sized input + small block_rows: exercises the in-kernel masking and
    # multiple independent (parallel) grid blocks.
    y_pred2 = jax.random.normal(k3, (2, 3, 17, 19), dtype=jnp.float32)
    y_true2 = (jax.random.uniform(k4, (2, 3, 17, 19)) > 0.5).astype(jnp.float32)
    loss2 = jax.block_until_ready(
        dice_loss(y_pred2, y_true2, smooth=1.0, sigmoid=True, block_rows=8))
    ref2 = dice_loss_ref(y_pred2, y_true2, smooth=1.0, sigmoid=True)
    assert jnp.allclose(loss2, ref2, atol=1e-5, rtol=1e-5), (loss2, ref2)

    # sigmoid=False path (no transcendental, no pad correction needed).
    probs = jax.nn.sigmoid(y_pred)
    loss3 = jax.block_until_ready(dice_loss(probs, y_true, smooth=1.0, sigmoid=False))
    ref3 = dice_loss_ref(probs, y_true, smooth=1.0, sigmoid=False)
    assert jnp.allclose(loss3, ref3, atol=1e-5, rtol=1e-5), (loss3, ref3)

    print("KERNEL_OK")
</pallas_src>

<mosaic_0001>
module attributes {stable_mosaic.version = 11 : i64} {
  func.func @_dice_partials_kernel(%arg0: i32, %arg1: memref<16x128xf32, #tpu.memory_space<vmem>>, %arg2: memref<16x128xf32, #tpu.memory_space<vmem>>, %arg3: memref<1x3x8x128xf32, #tpu.memory_space<vmem>>) attributes {dimension_semantics = [#tpu.dimension_semantics<parallel>], iteration_bounds = array<i64: 1>, scalar_prefetch = 0 : i64, scratch_operands = 0 : i64, tpu.core_type = #tpu.core_type<tc>, window_params = [{transform_indices = @transform_0, window_bounds = array<i64: 16, 128>}, {transform_indices = @transform_1, window_bounds = array<i64: 16, 128>}, {transform_indices = @transform_2, window_bounds = array<i64: 1, 3, 8, 128>}]} {
    %c0 = arith.constant 0 : index
    %c0_0 = arith.constant 0 : index
    %0 = vector.load %arg1[%c0, %c0_0] : memref<16x128xf32, #tpu.memory_space<vmem>>, vector<16x128xf32>
    %c0_1 = arith.constant 0 : index
    %c0_2 = arith.constant 0 : index
    %1 = vector.load %arg2[%c0_1, %c0_2] : memref<16x128xf32, #tpu.memory_space<vmem>>, vector<16x128xf32>
    %cst = arith.constant 5.000000e-01 : f32
    %2 = vector.broadcast %cst : f32 to vector<16x128xf32>
    %3 = arith.mulf %2, %0 : vector<16x128xf32>
    %4 = math.tanh %3 : vector<16x128xf32>
    %cst_3 = arith.constant 5.000000e-01 : f32
    %5 = vector.broadcast %cst_3 : f32 to vector<16x128xf32>
    %6 = arith.mulf %5, %4 : vector<16x128xf32>
    %cst_4 = arith.constant 5.000000e-01 : f32
    %7 = vector.broadcast %cst_4 : f32 to vector<16x128xf32>
    %8 = arith.addf %6, %7 : vector<16x128xf32>
    %9 = arith.mulf %8, %1 : vector<16x128xf32>
    %10 = vector.shape_cast %9 : vector<16x128xf32> to vector<1x16x128xf32>
    %cst_5 = arith.constant dense<0.000000e+00> : vector<1xf32>
    %11 = vector.multi_reduction <add>, %10, %cst_5 [1, 2] : vector<1x16x128xf32> to vector<1xf32>
    %12 = vector.shape_cast %11 : vector<1xf32> to vector<1x1x1xf32>
    %13 = vector.extract %12[0, 0, 0] : f32 from vector<1x1x1xf32>
    %14 = vector.shape_cast %8 : vector<16x128xf32> to vector<1x16x128xf32>
    %cst_6 = arith.constant dense<0.000000e+00> : vector<1xf32>
    %15 = vector.multi_reduction <add>, %14, %cst_6 [1, 2] : vector<1x16x128xf32> to vector<1xf32>
    %16 = vector.shape_cast %15 : vector<1xf32> to vector<1x1x1xf32>
    %17 = vector.extract %16[0, 0, 0] : f32 from vector<1x1x1xf32>
    %18 = vector.shape_cast %1 : vector<16x128xf32> to vector<1x16x128xf32>
    %cst_7 = arith.constant dense<0.000000e+00> : vector<1xf32>
    %19 = vector.multi_reduction <add>, %18, %cst_7 [1, 2] : vector<1x16x128xf32> to vector<1xf32>
    %20 = vector.shape_cast %19 : vector<1xf32> to vector<1x1x1xf32>
    %21 = vector.extract %20[0, 0, 0] : f32 from vector<1x1x1xf32>
    %22 = vector.broadcast %13 : f32 to vector<8x128xf32>
    %c0_8 = arith.constant 0 : index
    %c0_9 = arith.constant 0 : index
    %c0_10 = arith.constant 0 : index
    %c0_11 = arith.constant 0 : index
    %23 = vector.load %arg3[%c0_8, %c0_9, %c0_10, %c0_11] : memref<1x3x8x128xf32, #tpu.memory_space<vmem>>, vector<1x1x8x128xf32>
    %24 = vector.shape_cast %23 : vector<1x1x8x128xf32> to vector<8x128xf32>
    %25 = vector.shape_cast %22 : vector<8x128xf32> to vector<1x1x8x128xf32>
    tpu.vector_store %arg3[%c0_8, %c0_9, %c0_10, %c0_11], %25 {strides = array<i32>} : memref<1x3x8x128xf32, #tpu.memory_space<vmem>>, vector<1x1x8x128xf32>,
    %26 = vector.broadcast %17 : f32 to vector<8x128xf32>
    %c0_12 = arith.constant 0 : index
    %c1 = arith.constant 1 : index
    %c0_13 = arith.constant 0 : index
    %c0_14 = arith.constant 0 : index
    %27 = vector.load %arg3[%c0_12, %c1, %c0_13, %c0_14] : memref<1x3x8x128xf32, #tpu.memory_space<vmem>>, vector<1x1x8x128xf32>
    %28 = vector.shape_cast %27 : vector<1x1x8x128xf32> to vector<8x128xf32>
    %29 = vector.shape_cast %26 : vector<8x128xf32> to vector<1x1x8x128xf32>
    tpu.vector_store %arg3[%c0_12, %c1, %c0_13, %c0_14], %29 {strides = array<i32>} : memref<1x3x8x128xf32, #tpu.memory_space<vmem>>, vector<1x1x8x128xf32>,
    %30 = vector.broadcast %21 : f32 to vector<8x128xf32>
    %c0_15 = arith.constant 0 : index
    %c2 = arith.constant 2 : index
    %c0_16 = arith.constant 0 : index
    %c0_17 = arith.constant 0 : index
    %31 = vector.load %arg3[%c0_15, %c2, %c0_16, %c0_17] : memref<1x3x8x128xf32, #tpu.memory_space<vmem>>, vector<1x1x8x128xf32>
    %32 = vector.shape_cast %31 : vector<1x1x8x128xf32> to vector<8x128xf32>
    %33 = vector.shape_cast %30 : vector<8x128xf32> to vector<1x1x8x128xf32>
    tpu.vector_store %arg3[%c0_15, %c2, %c0_16, %c0_17], %33 {strides = array<i32>} : memref<1x3x8x128xf32, #tpu.memory_space<vmem>>, vector<1x1x8x128xf32>,
    return
  }
  func.func @transform_0(%arg0: i32) -> (i32, i32) {
    %c0_i32 = arith.constant 0 : i32
    %c0_i32_0 = arith.constant 0 : i32
    return %arg0, %c0_i32 : i32, i32
  }
  func.func @transform_1(%arg0: i32) -> (i32, i32) {
    %c0_i32 = arith.constant 0 : i32
    %c0_i32_0 = arith.constant 0 : i32
    return %arg0, %c0_i32 : i32, i32
  }
  func.func @transform_2(%arg0: i32) -> (i32, i32, i32, i32) {
    %c0_i32 = arith.constant 0 : i32
    %c0_i32_0 = arith.constant 0 : i32
    %c0_i32_1 = arith.constant 0 : i32
    %c0_i32_2 = arith.constant 0 : i32
    return %arg0, %c0_i32, %c0_i32_0, %c0_i32_1 : i32, i32, i32, i32
  }
}

</mosaic_0001>

<llo_original>
// kernel: tpu_custom_call.1
$region0: #{tpu_custom_call.1}
  #allocation0 [shape = 'u32[]', space=smem, size = 0x4, offset = 0x4, fixed_abs, tag = 'smem constant byte address 0x4 - core index']
  #allocation1 [shape = 'u32[72,128]{1,0:T(1,128)}', space=vmem, size = 0x9000, scoped, tag = 'internal scratch']
  %s0 = inlined_call_operand.hbm [shape: f32[16,128], index: 0, kind: input, shape index: {}]
  %s1 = inlined_call_operand.hbm [shape: f32[16,128], index: 1, kind: input, shape index: {}]
  %s2 = inlined_call_operand.hbm [shape: f32[1,3,8,128], index: 2, kind: output, shape index: {}]
  %s3 = sld [smem:[#allocation0]]
  $region26: #{tpu_custom_call.1} parent=0
    _
  %s5 = ssub.s32 1, %s3
  %s6 = scalar_select 0, %s5, %s3
  $region1: #{tpu_custom_call.1} parent=0
    #allocation2 [shape = 'u8[8192]{0}', space=vmem, size = 0x2000, scoped, tag = 'input window, operand 0, single buffered']
    #allocation3 [shape = 's32[1]{0}', space=sflag, size = 0x4, scoped, tag = 'scoped memory for tpu_custom_call.1']
    #allocation4 [shape = 's32[1]{0}', space=sflag, size = 0x4, scoped, tag = 'scoped memory for tpu_custom_call.1']
    #allocation5 [shape = 'u8[8192]{0}', space=vmem, size = 0x2000, scoped, tag = 'input window, operand 1, single buffered']
    #allocation6 [shape = 's32[1]{0}', space=sflag, size = 0x4, scoped, tag = 'scoped memory for tpu_custom_call.1']
    #allocation7 [shape = 'u8[12288]{0}', space=vmem, size = 0x3000, scoped, tag = 'output window, operand 0, single buffered']
    %7 = vsyncpa [#allocation3], 0
    %8 = vsyncpa [#allocation6], 0
    %9 = vsyncpa [#allocation4], 0
    // Predicated region
    $region2: #{tpu_custom_call.1} parent=1 // pred_check
      _
    $region3: #{tpu_custom_call.1} parent=1 // pred_check_branch
      %11 = sbr.rel (0) target = $region5
    $region4: #{tpu_custom_call.1} parent=1 // pred_region
      %13 = vsyncadd [#allocation3], 0
      %s14 = sshll.u32 %s0, 4
      %s15 = int_to_ptr.hbm [resolvable:$true] %s14
      %s16 = sshll.u32 [#allocation2], 4
      %s17 = int_to_ptr.vmem [resolvable:$true] %s16
      %22 = dma.hbm_to_vmem [thread:$0]  %s15, 256, %s17, [#allocation3], 128, 128, 8
    $region5: #{tpu_custom_call.1} parent=1 // pred_fallthru
      _
    // Predicated region
    $region6: #{tpu_custom_call.1} parent=1 // pred_check
      _
    $region7: #{tpu_custom_call.1} parent=1 // pred_check_branch
      %24 = sbr.rel (0) target = $region9
    $region8: #{tpu_custom_call.1} parent=1 // pred_region
      %26 = vsyncadd [#allocation6], 0
      %s27 = sshll.u32 %s1, 4
      %s28 = int_to_ptr.hbm [resolvable:$true] %s27
      %s29 = sshll.u32 [#allocation5], 4
      %s30 = int_to_ptr.vmem [resolvable:$true] %s29
      %35 = dma.hbm_to_vmem [thread:$0]  %s28, 256, %s30, [#allocation6], 128, 128, 8
    $region9: #{tpu_custom_call.1} parent=1 // pred_fallthru
      _
    // Predicated region
    $region10: #{tpu_custom_call.1} parent=1 // pred_check
      _
    $region11: #{tpu_custom_call.1} parent=1 // pred_check_branch
      %37 = sbr.rel (0) target = $region13
    $region12: #{tpu_custom_call.1} parent=1 // pred_region
      %39 = dma.done [#allocation3], 256
    $region13: #{tpu_custom_call.1} parent=1 // pred_fallthru
      _
    // Predicated region
    $region14: #{tpu_custom_call.1} parent=1 // pred_check
      _
    $region15: #{tpu_custom_call.1} parent=1 // pred_check_branch
      %41 = sbr.rel (0) target = $region17
    $region16: #{tpu_custom_call.1} parent=1 // pred_region
      %43 = dma.done [#allocation6], 256
    $region17: #{tpu_custom_call.1} parent=1 // pred_fallthru
      _
    %v44 = vld [vmem:[#allocation2] sm:$0xff]
    %v45 = vld [vmem:[#allocation2 + $0x8] sm:$0xff]
    %v46 = vld [vmem:[#allocation5] sm:$0xff]
    %v47 = vld [vmem:[#allocation5 + $0x8] sm:$0xff]
    %v48 = vmul.f32 %v44, 0.5
    %v49 = vmul.f32 %v45, 0.5
    %v50 = vtanh.pop %v48
    %v51 = vtanh.pop %v49
    %v52 = vmul.f32 %v50, 0.5
    %v53 = vmul.f32 %v51, 0.5
    %v54 = vadd.f32 %v52, 0.5
    %v55 = vadd.f32 %v53, 0.5
    %v56 = vmul.f32 %v54, %v46
    %v57 = vmul.f32 %v55, %v47
    %v58 = vadd.f32 %v56, %v57
    %59 = vadd.xlane.f32.xlu0 %v58
    %v60 = vpop.xlane.xlu0 %59
    %v61 = vrot.slane %v60, 4
    %v62 = vadd.f32 %v60, %v61
    %v63 = vrot.slane %v62, 2
    %v64 = vadd.f32 %v62, %v63
    %v65 = vrot.slane %v64, 1
    %v66 = vadd.f32 %v64, %v65
    %s67 = vtos %v66
    %v68 = vadd.f32 %v54, %v55
    %69 = vadd.xlane.f32.xlu0 %v68
    %v70 = vpop.xlane.xlu0 %69
    %v71 = vrot.slane %v70, 4
    %v72 = vadd.f32 %v70, %v71
    %v73 = vrot.slane %v72, 2
    %v74 = vadd.f32 %v72, %v73
    %v75 = vrot.slane %v74, 1
    %v76 = vadd.f32 %v74, %v75
    %s77 = vtos %v76
    %v78 = vadd.f32 %v46, %v47
    %79 = vadd.xlane.f32.xlu0 %v78
    %v80 = vpop.xlane.xlu0 %79
    %v81 = vrot.slane %v80, 4
    %v82 = vadd.f32 %v80, %v81
    %v83 = vrot.slane %v82, 2
    %v84 = vadd.f32 %v82, %v83
    %v85 = vrot.slane %v84, 1
    %v86 = vadd.f32 %v84, %v85
    %s87 = vtos %v86
    %v88 = vstv %s67
    %89 = vst [vmem:[#allocation7] sm:$0xff] %v88
    %v90 = vstv %s77
    %s91 = scalar_lea.vmem [#allocation7], 8
    %92 = vst [vmem:[%s91] sm:$0xff] %v90
    %v93 = vstv %s87
    %s94 = scalar_lea.vmem [#allocation7], 16
    %95 = vst [vmem:[%s94] sm:$0xff] %v93
    // Predicated region
    $region18: #{tpu_custom_call.1} parent=1 // pred_check
      _
    $region19: #{tpu_custom_call.1} parent=1 // pred_check_branch
      %97 = sbr.rel (0) target = $region21
    $region20: #{tpu_custom_call.1} parent=1 // pred_region
      %99 = vsyncadd [#allocation4], 0
      %s100 = sshll.u32 [#allocation7], 4
      %s101 = int_to_ptr.vmem [resolvable:$true] %s100
      %s102 = sshll.u32 %s2, 4
      %s103 = int_to_ptr.hbm [resolvable:$true] %s102
      %108 = dma.vmem_to_hbm [thread:$0]  %s101, 384, %s103, [#allocation4], 128, 128, 8
    $region21: #{tpu_custom_call.1} parent=1 // pred_fallthru
      _
    // Predicated region
    $region22: #{tpu_custom_call.1} parent=1 // pred_check
      _
    $region23: #{tpu_custom_call.1} parent=1 // pred_check_branch
      %110 = sbr.rel (0) target = $region25
    $region24: #{tpu_custom_call.1} parent=1 // pred_region
      %112 = dma.done [#allocation4], 384
    $region25: #{tpu_custom_call.1} parent=1 // pred_fallthru
      _
    %113 = vsyncpa [#allocation3], 1
    %114 = vsyncpa [#allocation6], 1
    %115 = vsyncpa [#allocation4], 1

</llo_original>
